<compile_context>
chip_gen: v5e
topology: v5e:2x2
jax: 0.10.0
libtpu: 0.0.40
codegen_flags: <defaults>
</compile_context>

<pallas_src>
import functools

import jax
import jax.numpy as jnp
import numpy as np
from jax.experimental import pallas as pl
from jax.experimental.pallas import tpu as pltpu


def _round_up(x, m):
    return (x + m - 1) // m * m


def _ntxent_kernel(rep_ref, out_ref, *, n_valid, batch, inv_temp, row_tile):
    tb = row_tile
    n_pad = rep_ref.shape[0]

    # Row tile is an aligned slice of the VMEM-resident rep block (no extra DMA).
    row0 = pl.multiple_of(pl.program_id(0) * tb, tb)
    rows = rep_ref[pl.ds(row0, tb), :]          # (TB, D)
    rep = rep_ref[...]                          # (Npad, D)

    # (TB, Npad) similarity block on the MXU, f32 accumulation, scaled by 1/T.
    sim = jax.lax.dot_general(
        rows, rep,
        dimension_numbers=(((1,), (1,)), ((), ())),
        preferred_element_type=jnp.float32,
    ) * inv_temp

    i_glob = row0 + jax.lax.broadcasted_iota(jnp.int32, (tb, 1), 0)    # (TB, 1)
    col = jax.lax.broadcasted_iota(jnp.int32, (tb, n_pad), 1)          # (TB, Npad)

    neg_big = jnp.float32(-1e30)
    # Exclude self-similarity and zero-padded columns from the denominator.
    masked = jnp.where((col == i_glob) | (col >= n_valid), neg_big, sim)

    m = jnp.max(masked, axis=-1, keepdims=True)                        # (TB, 1)
    denom = jnp.sum(jnp.exp(masked - m), axis=-1, keepdims=True)       # (TB, 1)
    lse = m + jnp.log(denom)                                           # (TB, 1)

    # Positive logit sim(i, pair(i)) / T selected by index arithmetic.
    pair = jnp.where(i_glob < batch, i_glob + batch, i_glob - batch)   # (TB, 1)
    pos = jnp.sum(jnp.where(col == pair, sim, 0.0), axis=-1, keepdims=True)

    loss = lse - pos                                                   # (TB, 1)
    # Zero out padded rows so the wrapper-side sum is exact.
    out_ref[...] = jnp.where(i_glob < n_valid, loss, 0.0)


def ntxent_loss(zis, zjs, *, temperature, use_cosine_similarity, row_tile=256):
    """zis, zjs: (B, D) float arrays -> scalar f32 NT-Xent loss."""
    b, d = zis.shape
    n = 2 * b

    # representations = cat([zjs, zis], dim=0)   (matches the PyTorch ordering)
    rep = jnp.concatenate([zjs, zis], axis=0).astype(jnp.float32)
    if use_cosine_similarity:
        norm = jnp.sqrt(jnp.sum(rep * rep, axis=-1, keepdims=True))
        rep = rep / jnp.maximum(norm, 1e-8)

    # Row tile: multiple of 8 sublanes; pad rows so the grid divides evenly.
    tb = _round_up(min(int(row_tile), _round_up(n, 8)), 8)
    n_pad = _round_up(n, tb)
    rep_pad = jnp.pad(rep, ((0, n_pad - n), (0, 0))) if n_pad > n else rep
    grid = (n_pad // tb,)

    kernel = functools.partial(
        _ntxent_kernel, n_valid=n, batch=b,
        inv_temp=float(1.0 / temperature), row_tile=tb,
    )

    # VMEM budget: resident rep + row-tile slice + sim/iota blocks + output.
    vmem_need = 4 * (2 * n_pad * d + 2 * tb * d + 3 * tb * n_pad + 4 * tb) + (1 << 20)
    vmem_limit = int(min(max(vmem_need, 32 * 1024 * 1024), 64 * 1024 * 1024))

    per_row = pl.pallas_call(
        kernel,
        out_shape=jax.ShapeDtypeStruct((n_pad, 1), jnp.float32),
        grid=grid,
        in_specs=[
            pl.BlockSpec((n_pad, d), lambda i: (0, 0)),    # full rep, DMA'd once
        ],
        out_specs=pl.BlockSpec((tb, 1), lambda i: (i, 0)),
        compiler_params=pltpu.CompilerParams(
            dimension_semantics=("parallel",),
            vmem_limit_bytes=vmem_limit,
        ),
    )(rep_pad)

    # CrossEntropyLoss(reduction='sum') / (2 * batch_size)
    return jnp.sum(per_row) / jnp.float32(n)


def _ntxent_ref(zis, zjs, temperature, use_cosine_similarity):
    """Pure-JAX reference mirroring the PyTorch forward structure."""
    b, _ = zis.shape
    n = 2 * b
    rep = jnp.concatenate([zjs, zis], axis=0).astype(jnp.float32)
    if use_cosine_similarity:
        nrm = jnp.maximum(jnp.linalg.norm(rep, axis=-1, keepdims=True), 1e-8)
        a = rep / nrm
        sim = a @ a.T
    else:
        sim = rep @ rep.T

    l_pos = jnp.diagonal(sim, b)
    r_pos = jnp.diagonal(sim, -b)
    positives = jnp.concatenate([l_pos, r_pos]).reshape(n, 1)

    mask = np.ones((n, n), dtype=bool)
    mask &= ~np.eye(n, dtype=bool)
    mask &= ~np.eye(n, k=b, dtype=bool)
    mask &= ~np.eye(n, k=-b, dtype=bool)
    ri, ci = np.nonzero(mask)
    negatives = sim[ri, ci].reshape(n, n - 2)

    logits = jnp.concatenate([positives, negatives], axis=1) / temperature
    logp = jax.nn.log_softmax(logits, axis=-1)
    loss = -jnp.sum(logp[:, 0])          # CrossEntropy(sum) with labels == 0
    return loss / n


if __name__ == "__main__":
    key = jax.random.PRNGKey(0)
    k1, k2 = jax.random.split(key)

    dim = 32
    temperature = 0.5

    # batch=8 -> 2 grid steps (no padding); batch=6 -> padded rows/cols path.
    for batch in (8, 6):
        zis = jax.random.normal(k1, (batch, dim), dtype=jnp.float32)
        zjs = jax.random.normal(k2, (batch, dim), dtype=jnp.float32)
        for use_cos in (True, False):
            out = ntxent_loss(
                zis, zjs, temperature=temperature,
                use_cosine_similarity=use_cos, row_tile=8,
            )
            out = jax.block_until_ready(out)
            ref = _ntxent_ref(zis, zjs, temperature, use_cos)
            assert jnp.allclose(out, ref, atol=1e-4, rtol=1e-4), (
                batch, use_cos, out, ref)

    print("KERNEL_OK")
</pallas_src>

<mosaic_0001>
module attributes {stable_mosaic.version = 11 : i64} {
  func.func @_ntxent_kernel(%arg0: i32, %arg1: memref<16x32xf32, #tpu.memory_space<vmem>>, %arg2: memref<8x1xf32, #tpu.memory_space<vmem>>) attributes {dimension_semantics = [#tpu.dimension_semantics<parallel>], iteration_bounds = array<i64: 2>, scalar_prefetch = 0 : i64, scratch_operands = 0 : i64, tpu.core_type = #tpu.core_type<tc>, window_params = [{pipeline_mode = #tpu.pipeline_mode<synchronous>, transform_indices = @transform_0, window_bounds = array<i64: 16, 32>}, {transform_indices = @transform_1, window_bounds = array<i64: 8, 1>}]} {
    %c8_i32 = arith.constant 8 : i32
    %0 = arith.muli %arg0, %c8_i32 : i32
    %1 = tpu.assume_multiple %0, 8 : i32
    %2 = arith.index_cast %1 : i32 to index
    %c0 = arith.constant 0 : index
    %3 = vector.load %arg1[%2, %c0] : memref<16x32xf32, #tpu.memory_space<vmem>>, vector<8x32xf32>
    %c0_0 = arith.constant 0 : index
    %c0_1 = arith.constant 0 : index
    %4 = vector.load %arg1[%c0_0, %c0_1] : memref<16x32xf32, #tpu.memory_space<vmem>>, vector<16x32xf32>
    %cst = arith.constant dense<0.000000e+00> : vector<8x16xf32>
    %5 = tpu.matmul %3, %4, %cst {dimension_numbers = #tpu.dot_dimension_numbers<[1], [1], [0], [0], [0, 0, 1, 0], [], []>} : vector<8x32xf32>, vector<16x32xf32>, vector<8x16xf32> -> vector<8x16xf32>
    %cst_2 = arith.constant 2.000000e+00 : f32
    %6 = vector.broadcast %cst_2 : f32 to vector<8x16xf32>
    %7 = arith.mulf %5, %6 : vector<8x16xf32>
    %8 = tpu.iota {dimensions = array<i32: 0>} : vector<8x1xi32>
    %9 = vector.broadcast %1 : i32 to vector<8x1xi32>
    %10 = arith.addi %9, %8 : vector<8x1xi32>
    %11 = tpu.iota {dimensions = array<i32: 1>} : vector<8x16xi32>
    %12 = vector.broadcast %10 : vector<8x1xi32> to vector<8x16xi32>
    %13 = arith.cmpi eq, %11, %12 : vector<8x16xi32>
    %c16_i32 = arith.constant 16 : i32
    %14 = vector.broadcast %c16_i32 : i32 to vector<8x16xi32>
    %15 = arith.cmpi sge, %11, %14 : vector<8x16xi32>
    %16 = arith.ori %13, %15 : vector<8x16xi1>
    %cst_3 = arith.constant -1.000000e+30 : f32
    %17 = vector.broadcast %cst_3 : f32 to vector<8x16xf32>
    %18 = arith.select %16, %17, %7 : vector<8x16xi1>, vector<8x16xf32>
    %cst_4 = arith.constant dense<0xFF800000> : vector<8xf32>
    %19 = vector.multi_reduction <maximumf>, %18, %cst_4 [1] : vector<8x16xf32> to vector<8xf32>
    %20 = vector.shape_cast %19 : vector<8xf32> to vector<8x1xf32>
    %21 = vector.broadcast %20 : vector<8x1xf32> to vector<8x16xf32>
    %22 = arith.subf %18, %21 : vector<8x16xf32>
    %23 = math.exp %22 : vector<8x16xf32>
    %cst_5 = arith.constant dense<0.000000e+00> : vector<8xf32>
    %24 = vector.multi_reduction <add>, %23, %cst_5 [1] : vector<8x16xf32> to vector<8xf32>
    %25 = vector.shape_cast %24 : vector<8xf32> to vector<8x1xf32>
    %26 = math.log %25 : vector<8x1xf32>
    %27 = arith.addf %20, %26 : vector<8x1xf32>
    %c8_i32_6 = arith.constant 8 : i32
    %28 = vector.broadcast %c8_i32_6 : i32 to vector<8x1xi32>
    %29 = arith.cmpi slt, %10, %28 : vector<8x1xi32>
    %c8_i32_7 = arith.constant 8 : i32
    %30 = vector.broadcast %c8_i32_7 : i32 to vector<8x1xi32>
    %31 = arith.addi %10, %30 : vector<8x1xi32>
    %c8_i32_8 = arith.constant 8 : i32
    %32 = vector.broadcast %c8_i32_8 : i32 to vector<8x1xi32>
    %33 = arith.subi %10, %32 : vector<8x1xi32>
    %34 = arith.select %29, %31, %33 : vector<8x1xi1>, vector<8x1xi32>
    %35 = vector.broadcast %34 : vector<8x1xi32> to vector<8x16xi32>
    %36 = arith.cmpi eq, %11, %35 : vector<8x16xi32>
    %cst_9 = arith.constant 0.000000e+00 : f32
    %37 = vector.broadcast %cst_9 : f32 to vector<8x16xf32>
    %38 = arith.select %36, %7, %37 : vector<8x16xi1>, vector<8x16xf32>
    %cst_10 = arith.constant dense<0.000000e+00> : vector<8xf32>
    %39 = vector.multi_reduction <add>, %38, %cst_10 [1] : vector<8x16xf32> to vector<8xf32>
    %40 = vector.shape_cast %39 : vector<8xf32> to vector<8x1xf32>
    %41 = arith.subf %27, %40 : vector<8x1xf32>
    %c16_i32_11 = arith.constant 16 : i32
    %42 = vector.broadcast %c16_i32_11 : i32 to vector<8x1xi32>
    %43 = arith.cmpi slt, %10, %42 : vector<8x1xi32>
    %cst_12 = arith.constant 0.000000e+00 : f32
    %44 = vector.broadcast %cst_12 : f32 to vector<8x1xf32>
    %45 = arith.select %43, %41, %44 : vector<8x1xi1>, vector<8x1xf32>
    %c0_13 = arith.constant 0 : index
    %c0_14 = arith.constant 0 : index
    %46 = vector.load %arg2[%c0_13, %c0_14] : memref<8x1xf32, #tpu.memory_space<vmem>>, vector<8x1xf32>
    tpu.vector_store %arg2[%c0_13, %c0_14], %45 {strides = array<i32>} : memref<8x1xf32, #tpu.memory_space<vmem>>, vector<8x1xf32>,
    return
  }
  func.func @transform_0(%arg0: i32) -> (i32, i32) {
    %c0_i32 = arith.constant 0 : i32
    %c0_i32_0 = arith.constant 0 : i32
    %c0_i32_1 = arith.constant 0 : i32
    return %c0_i32, %c0_i32_0 : i32, i32
  }
  func.func @transform_1(%arg0: i32) -> (i32, i32) {
    %c0_i32 = arith.constant 0 : i32
    %c0_i32_0 = arith.constant 0 : i32
    return %arg0, %c0_i32 : i32, i32
  }
}

</mosaic_0001>

<llo_original>
// kernel: tpu_custom_call.1
$region0: #{tpu_custom_call.1}
  #allocation0 [shape = 'u32[]', space=smem, size = 0x4, offset = 0x4, fixed_abs, tag = 'smem constant byte address 0x4 - core index']
  #allocation1 [shape = 'u32[72,128]{1,0:T(1,128)}', space=vmem, size = 0x9000, scoped, tag = 'internal scratch']
  %s0 = inlined_call_operand.hbm [shape: f32[16,32], index: 0, kind: input, shape index: {}]
  %s1 = inlined_call_operand.vmem [shape: f32[16,1], index: 1, kind: output, shape index: {}]
  %s2 = sld [smem:[#allocation0]]
  $region41: #{tpu_custom_call.1} parent=0
    _
  %s4 = ssub.s32 1, %s2
  %s5 = scalar_select 0, %s4, %s2
  $region1: #{tpu_custom_call.1} parent=0
    #allocation2 [shape = 'u8[8192]{0}', space=vmem, size = 0x2000, scoped, tag = 'input window, operand 0, single buffered']
    #allocation3 [shape = 's32[2]{0}', space=sflag, size = 0x8, scoped, tag = 'scoped memory for tpu_custom_call.1']
    %6 = vsyncpa [#allocation3], 0
    loop: start=0, step=1, limit=4
    $region2: #{tpu_custom_call.1} parent=1 // loop_pre_header
      _
    $region3: #{tpu_custom_call.1} parent=1 // loop_header
      %s8 = sphi 0, %s12
      %p9 = scmp.ge.s32.totalorder %s8, 4
      %s16 = sphi 0, %s16
      %s18 = sphi 0, %s16
      %s19 = sphi 0, %s18
      %s33 = sphi 0, %s19
      %s39 = sphi 0, %s41
      %s42 = sphi 0, %s39
      %s43 = sphi 0, %s42
      %s59 = sphi 0, %s43
    $region4: #{tpu_custom_call.1} parent=1 // loop_header_branch
      %11 = sbr.rel (%p9) target = $region8
    $region5: #{tpu_custom_call.1} parent=1 // loop_body
      %s13 = ssub.s32 %s8, 1
      %s14 = ssub.s32 %s8, 2
      %s15 = sadd.s32 %s8, 1
      %s17 = sadd.s32 %s16, 1
      %p20 = scmp.eq.s32.totalorder %s8, 1
      %p21 = scmp.ne.s32.totalorder %s16, %s18
      %p22 = scmp.eq.s32.totalorder %s8, 0
      %p23 = por %p21, %p22
      %p24 = scmp.ne.s32.totalorder %s16, %s18
      %p25 = scmp.eq.s32.totalorder %s13, 1
      %p26 = por %p24, %p25
      %p27 = scmp.ne.s32.totalorder %s18, %s19
      %p28 = scmp.eq.s32.totalorder %s13, 0
      %p29 = por %p27, %p28
      %p30 = scmp.ne.s32.totalorder %s18, %s19
      %p31 = scmp.eq.s32.totalorder %s14, 1
      %p32 = por %p30, %p31
      %p34 = scmp.ne.s32.totalorder %s19, %s33
      %p35 = scmp.eq.s32.totalorder %s14, 0
      %p36 = por %p34, %p35
      %s37 = ssub.s32 %s8, %s15
      %p38 = scmp.eq.s32.totalorder %s37, 0
      %s40 = sadd.s32 %s39, 1
      %s41 = scalar_select %p38, %s39, %s40
      %p44 = pneg %p38
      %p45 = scmp.eq.s32.totalorder %s8, 1
      %p46 = por %p44, %p45
      %p47 = scmp.ne.s32.totalorder %s39, %s42
      %p48 = scmp.eq.s32.totalorder %s8, 0
      %p49 = por %p47, %p48
      %p50 = scmp.ne.s32.totalorder %s39, %s42
      %p51 = scmp.eq.s32.totalorder %s13, 1
      %p52 = por %p50, %p51
      %p53 = scmp.ne.s32.totalorder %s42, %s43
      %p54 = scmp.eq.s32.totalorder %s13, 0
      %p55 = por %p53, %p54
      %p56 = scmp.ne.s32.totalorder %s42, %s43
      %p57 = scmp.eq.s32.totalorder %s14, 1
      %p58 = por %p56, %p57
      %p60 = scmp.ne.s32.totalorder %s43, %s59
      %p61 = scmp.eq.s32.totalorder %s14, 0
      %p62 = por %p60, %p61
      %p63 = scmp.le.s32.totalorder 1, %s8
      %p64 = scmp.lt.s32.totalorder %s8, 3
      %p65 = pnand %p63, %p64
      %p66 = pneg %p65
      // Predicated region
      $region9: #{tpu_custom_call.1} parent=5 // pred_check
        _
      $region10: #{tpu_custom_call.1} parent=5 // pred_check_branch
        %68 = sbr.rel (%p65) target = $region12
      $region11: #{tpu_custom_call.1} parent=5 // pred_region
        %s69 = ssub.s32 %s8, 1
        // Predicated region
        $region13: #{tpu_custom_call.1} parent=11 // pred_check
          %p70 = pneg %p29
        $region14: #{tpu_custom_call.1} parent=11 // pred_check_branch
          %72 = sbr.rel (%p70) target = $region16
        $region15: #{tpu_custom_call.1} parent=11 // pred_region
          %74 = vsyncadd [#allocation3], 0
          %s75 = sshll.u32 %s0, 4
          %s76 = int_to_ptr.hbm [resolvable:$true] %s75
          %s77 = sshll.u32 [#allocation2], 4
          %s78 = int_to_ptr.vmem [resolvable:$true] %s77
          %83 = dma.hbm_to_vmem [thread:$0]  %s76, 256, %s78, [#allocation3], 128, 128, 8
        $region16: #{tpu_custom_call.1} parent=11 // pred_fallthru
          _
      $region12: #{tpu_custom_call.1} parent=5 // pred_fallthru
        _
      %p84 = scmp.lt.s32.totalorder %s8, 2
      // Predicated region
      $region17: #{tpu_custom_call.1} parent=5 // pred_check
        %p85 = pneg %p84
      $region18: #{tpu_custom_call.1} parent=5 // pred_check_branch
        %87 = sbr.rel (%p85) target = $region20
      $region19: #{tpu_custom_call.1} parent=5 // pred_region
        _
      $region20: #{tpu_custom_call.1} parent=5 // pred_fallthru
        _
      %p88 = scmp.le.s32.totalorder 1, %s8
      %p89 = scmp.lt.s32.totalorder %s8, 3
      %p90 = pnand %p88, %p89
      %p91 = pneg %p90
      // Predicated region
      $region21: #{tpu_custom_call.1} parent=5 // pred_check
        _
      $region22: #{tpu_custom_call.1} parent=5 // pred_check_branch
        %93 = sbr.rel (%p90) target = $region24
      $region23: #{tpu_custom_call.1} parent=5 // pred_region
        %s94 = ssub.s32 %s8, 1
        // Predicated region
        $region25: #{tpu_custom_call.1} parent=23 // pred_check
          %p95 = pneg %p29
        $region26: #{tpu_custom_call.1} parent=23 // pred_check_branch
          %97 = sbr.rel (%p95) target = $region28
        $region27: #{tpu_custom_call.1} parent=23 // pred_region
          %99 = dma.done [#allocation3], 256
        $region28: #{tpu_custom_call.1} parent=23 // pred_fallthru
          _
        %p100 = pneg %p29
        %p101 = pneg %p26
        %p102 = pneg %p55
        %p103 = pneg %p52
        %p104 = scmp.lt.s32.totalorder %s13, 1
        %s105 = scalar_select %p104, %s13, 1
        %s106 = smul.addr %s105, 8
        %s107 = scalar_lea.vmem %s1, %s106
        %p108 = scmp.lt.s32.totalorder %s13, 1
        %s109 = scalar_select %p108, %s13, 1
        %s110 = smul.addr %s109, 8
        %s111 = scalar_lea.vmem %s1, %s110
        %s112 = smul.u32 %s13, 8
        %s113 = scalar_lea.vmem [#allocation2], %s112
        %v114 = vld [vmem:[%s113] sm:$0xff]
        %v115 = vld [vmem:[#allocation2] sm:$0xff]
        %v116 = vld [vmem:[#allocation2 + $0x8] sm:$0xff]
        %vm117 = vcmask 261120
        %v119 = vsel %vm117, %v114, 0
        %v122 = vsel %vm117, %v115, 0
        %v125 = vsel %vm117, %v116, 0
        %127 = vmatpush.xpose.msra.mxu0 0.0
        %128 = vmatpush.xpose.msra.mxu0 0.0
        %129 = vmatpush.xpose.msra.mxu0 0.0
        %130 = vmatpush.xpose.msra.mxu0 0.0
        %131 = vmatpush.xpose.msra.mxu0 0.0
        %132 = vmatpush.xpose.msra.mxu0 0.0
        %133 = vmatpush.xpose.msra.mxu0 0.0
        %134 = vmatpush.xpose.msra.mxu0 0.0
        %135 = vmatpush.xpose.msra.mxu0 0.0
        %136 = vmatpush.xpose.msra.mxu0 0.0
        %137 = vmatpush.xpose.msra.mxu0 0.0
        %138 = vmatpush.xpose.msra.mxu0 0.0
        %139 = vmatpush.xpose.msra.mxu0 0.0
        %140 = vmatpush.xpose.msra.mxu0 0.0
        %141 = vmatpush.xpose.msra.mxu0 %v125
        %142 = vmatpush.xpose.msra.mxu0 %v122
        %143 = vmatmul.f32.gmra.mxu0 %v119
        %v144 = vpop.f32.mrf.mxu0
        %v145 = vadd.f32 0.0, %v144
        %146 = vdwg.mxu0
        %v147 = vmul.f32 %v145, 2.0
        %v148 = vlaneseq
        %v149 = vshrl.u32 %v148, 7
        %v150 = vstv %s112
        %v151 = vadd.s32 %v150, %v149
        %v152 = vlaneseq
        %v153 = vand.u32 %v152, 127
        %vm154 = vcmp.eq.s32.totalorder %v153, %v151
        %vm155 = vcmp.ge.s32.totalorder %v153, 16
        %vm156 = vmor %vm154, %vm155
        %v157 = vsel %vm156, -1e+30, %v147
        %vm158 = vcmask 130048
        %v159 = vsel %vm158, %v157, -inf
        %160 = vmax.xlane.f32.xlu0 %v159
        %v161 = vpop.xlane.xlu0 %160
        %v162 = vsub.f32 %v157, %v161
        %v163 = vmul.f32 %v162, 1.442695
        %v164 = vpow.pop %v163
        %v165 = vsel %vm158, %v164, 0.0
        %166 = vadd.xlane.f32.xlu0 %v165
        %v167 = vpop.xlane.xlu0 %166
        %v168 = vlog2.pop %v167
        %v169 = vmul.f32 %v168, 0.6931472
        %v170 = vadd.f32 %v161, %v169
        %vm171 = vcmp.lt.s32.totalorder %v151, 8
        %v172 = vadd.s32 %v151, 8
        %v173 = vsub.s32 %v151, 8
        %v174 = vsel %vm171, %v172, %v173
        %vm175 = vcmp.eq.s32.totalorder %v153, %v174
        %v176 = vsel %vm175, %v147, 0.0
        %v177 = vsel %vm158, %v176, 0.0
        %178 = vadd.xlane.f32.xlu0 %v177
        %v179 = vpop.xlane.xlu0 %178
        %v180 = vsub.f32 %v170, %v179
        %vm181 = vcmp.lt.s32.totalorder %v151, 16
        %v182 = vsel %vm181, %v180, 0.0
        %vm183 = vcmask 7168
        %184 = vst.msk [vmem:[%s111] sm:$0xff] %vm183, %v182
        %p185 = scmp.lt.s32.totalorder %s13, 1
        %s186 = scalar_select %p185, %s13, 1
        %s187 = smul.addr %s186, 8
        %s188 = scalar_lea.vmem %s1, %s187
        // Predicated region
        $region29: #{tpu_custom_call.1} parent=23 // pred_check
          %p189 = pneg %p52
        $region30: #{tpu_custom_call.1} parent=23 // pred_check_branch
          %191 = sbr.rel (%p189) target = $region32
        $region31: #{tpu_custom_call.1} parent=23 // pred_region
          _
        $region32: #{tpu_custom_call.1} parent=23 // pred_fallthru
          _
      $region24: #{tpu_custom_call.1} parent=5 // pred_fallthru
        _
      %p192 = scmp.le.s32.totalorder 2, %s8
      // Predicated region
      $region33: #{tpu_custom_call.1} parent=5 // pred_check
        %p193 = pneg %p192
      $region34: #{tpu_custom_call.1} parent=5 // pred_check_branch
        %195 = sbr.rel (%p193) target = $region36
      $region35: #{tpu_custom_call.1} parent=5 // pred_region
        %s196 = ssub.s32 %s8, 2
        // Predicated region
        $region37: #{tpu_custom_call.1} parent=35 // pred_check
          %p197 = pneg %p58
        $region38: #{tpu_custom_call.1} parent=35 // pred_check_branch
          %199 = sbr.rel (%p197) target = $region40
        $region39: #{tpu_custom_call.1} parent=35 // pred_region
          %p200 = scmp.lt.s32.totalorder %s14, 1
          %s201 = scalar_select %p200, %s14, 1
          %s202 = smul.addr %s201, 8
          %s203 = scalar_lea.vmem %s1, %s202
        $region40: #{tpu_custom_call.1} parent=35 // pred_fallthru
          _
      $region36: #{tpu_custom_call.1} parent=5 // pred_fallthru
        _
    $region6: #{tpu_custom_call.1} parent=1 // loop_footer
      %s12 = sadd.s32 1, %s8
    $region7: #{tpu_custom_call.1} parent=1 // loop_footer_branch
      %7 = sbr.rel target = $region3
    $region8: #{tpu_custom_call.1} parent=1 // loop_exit
      _
    %204 = vsyncpa [#allocation3], 1
    %s205 = scalar_lea.sflag [#allocation3], 1
    %206 = vsyncpa %s205, 1

</llo_original>
